<compile_context>
chip_gen: v5e
topology: v5e:2x2
jax: 0.10.0
libtpu: 0.0.40
codegen_flags: <defaults>
</compile_context>

<pallas_src>
import functools

import jax
import jax.numpy as jnp
from jax.experimental import pallas as pl
from jax.experimental.pallas import tpu as pltpu


VMEM_SPEC = pl.BlockSpec(memory_space=pltpu.MemorySpace.VMEM)
SMEM_SPEC = pl.BlockSpec(memory_space=pltpu.MemorySpace.SMEM)


# --------------------------------------------------------------------------
# Image encoder kernel: GAP -> FC(embed_size) -> L2 norm
# Input layout [B, H*W, C]: channels on the lane axis (dense vregs, matmul-ready),
# spatial on the sublane axis so the pooling reduce is cheap.
# --------------------------------------------------------------------------
def _img_enc_kernel(img_ref, w_ref, b_ref, out_ref, *, image_norm):
    img = img_ref[...].astype(jnp.float32)                     # [TB, HW, C]
    pooled = jnp.mean(img, axis=1)                             # [TB, C] f32
    feat = jnp.dot(pooled.astype(jnp.bfloat16), w_ref[...],
                   preferred_element_type=jnp.float32) + b_ref[...]   # [TB, E]
    if image_norm:
        norm = jnp.sqrt(jnp.sum(feat * feat, axis=-1, keepdims=True)) + 1e-12
        feat = feat / norm
    out_ref[...] = feat


def encode_image(images_nchw, w, b, *, image_norm=True, block_b=8):
    B, C, H, W = images_nchw.shape
    E = w.shape[1]
    assert B % block_b == 0
    # NCHW -> [B, H*W, C] (channels last => lane axis); bf16 halves HBM/VMEM traffic.
    img = jnp.transpose(images_nchw.reshape(B, C, H * W), (0, 2, 1)).astype(jnp.bfloat16)
    w_bf = w.astype(jnp.bfloat16)
    return pl.pallas_call(
        functools.partial(_img_enc_kernel, image_norm=image_norm),
        out_shape=jax.ShapeDtypeStruct((B, E), jnp.float32),
        grid=(B // block_b,),
        in_specs=[
            pl.BlockSpec((block_b, H * W, C), lambda i: (i, 0, 0)),
            pl.BlockSpec((C, E), lambda i: (0, 0)),
            pl.BlockSpec((1, E), lambda i: (0, 0)),
        ],
        out_specs=pl.BlockSpec((block_b, E), lambda i: (i, 0)),
        compiler_params=pltpu.CompilerParams(dimension_semantics=("parallel",)),
    )(img, w_bf, b)


# --------------------------------------------------------------------------
# Text encoder kernel: single-layer (bi-)GRU, hidden state at t = len-1, L2 norm.
# Fused gate weights (PyTorch gate order r, z, n concatenated on the lane axis):
#   wi_* [D, 3E], wh_* [E, 3E], bi_*/bh_* [1, 3E]
# The input projection for all timesteps is computed up front as one big matmul
# into a VMEM scratch; the recurrent loop only does h @ Wh per step.
# --------------------------------------------------------------------------
def _gru_cell(gi, h, wh_ref, bh_ref, E):
    gh = jnp.dot(h.astype(jnp.bfloat16), wh_ref[...],
                 preferred_element_type=jnp.float32) + bh_ref[...]      # [B, 3E]
    r = jax.nn.sigmoid(gi[:, :E] + gh[:, :E])
    z = jax.nn.sigmoid(gi[:, E:2 * E] + gh[:, E:2 * E])
    n = jnp.tanh(gi[:, 2 * E:] + r * gh[:, 2 * E:])
    return (1.0 - z) * n + z * h


def _txt_enc_kernel(maxlen_ref, emb_ref, len_ref,
                    wif_ref, whf_ref, bif_ref, bhf_ref,
                    wib_ref, whb_ref, bib_ref, bhb_ref,
                    out_ref, gi_f_ref, gi_b_ref,
                    *, use_bi_gru, text_norm):
    B, E = out_ref.shape
    ml = maxlen_ref[0]                                # scalar (SMEM): max(lengths)
    lens = len_ref[...]                               # [B, 1] int32

    # Hoisted input projection: one [T*B, D] @ [D, 3E] matmul per direction.
    emb = emb_ref[...]                                # [T*B, D] bf16
    gi_f_ref[...] = jnp.dot(emb, wif_ref[...],
                            preferred_element_type=jnp.float32) + bif_ref[...]
    if use_bi_gru:
        gi_b_ref[...] = jnp.dot(emb, wib_ref[...],
                                preferred_element_type=jnp.float32) + bib_ref[...]

    zero_h = jnp.zeros((B, E), jnp.float32)

    # forward direction: capture hidden at t == len-1; loop only over valid steps
    def fwd_step(t, carry):
        h, cap = carry
        row = pl.multiple_of(t * B, B)
        gi = gi_f_ref[pl.ds(row, B), :]               # [B, 3E]
        h_new = _gru_cell(gi, h, whf_ref, bhf_ref, E)
        cap = jnp.where((lens - 1) == t, h_new, cap)
        return (h_new, cap)

    _, cap_f = jax.lax.fori_loop(0, ml, fwd_step, (zero_h, zero_h))

    if use_bi_gru:
        # backward direction over the packed (length-masked) sequence
        def bwd_step(i, carry):
            h, cap = carry
            t = ml - 1 - i
            row = pl.multiple_of(t * B, B)
            gi = gi_b_ref[pl.ds(row, B), :]
            h_new = _gru_cell(gi, h, whb_ref, bhb_ref, E)
            valid = t < lens                          # only steps inside the sequence
            h = jnp.where(valid, h_new, h)
            cap = jnp.where((lens - 1) == t, h, cap)
            return (h, cap)

        _, cap_b = jax.lax.fori_loop(0, ml, bwd_step, (zero_h, zero_h))
        cap = (cap_f + cap_b) * 0.5
    else:
        cap = cap_f

    if text_norm:
        norm = jnp.sqrt(jnp.sum(cap * cap, axis=-1, keepdims=True)) + 1e-12
        cap = cap / norm
    out_ref[...] = cap


def encode_text(emb2d_bf16, lengths, params, *, use_bi_gru=True, text_norm=True):
    TB, _ = emb2d_bf16.shape
    B = lengths.shape[0]
    E = params["wh_f"].shape[0]
    lens2d = lengths.astype(jnp.int32).reshape(B, 1)
    max_len = jnp.max(lengths).astype(jnp.int32).reshape(1)
    bf = lambda x: x.astype(jnp.bfloat16)
    return pl.pallas_call(
        functools.partial(_txt_enc_kernel, use_bi_gru=use_bi_gru, text_norm=text_norm),
        out_shape=jax.ShapeDtypeStruct((B, E), jnp.float32),
        in_specs=[SMEM_SPEC, VMEM_SPEC, VMEM_SPEC] + [VMEM_SPEC] * 8,
        out_specs=VMEM_SPEC,
        scratch_shapes=[pltpu.VMEM((TB, 3 * E), jnp.float32),
                        pltpu.VMEM((TB, 3 * E), jnp.float32)],
    )(max_len, emb2d_bf16, lens2d,
      bf(params["wi_f"]), bf(params["wh_f"]), params["bi_f"], params["bh_f"],
      bf(params["wi_b"]), bf(params["wh_b"]), params["bi_b"], params["bh_b"])


# --------------------------------------------------------------------------
# cosine_sim + ContrastiveLoss fused kernel (both score orientations computed on
# the MXU so that every reduction is lane-wise).
# --------------------------------------------------------------------------
def _loss_kernel(img_ref, cap_ref, out_ref, *, margin, max_violation):
    im = img_ref[...]                                 # [B, E] bf16
    s = cap_ref[...]                                  # [B, E] bf16
    # cosine_sim: embeddings already L2-normalized -> plain inner products.
    scores = jax.lax.dot_general(im, s, (((1,), (1,)), ((), ())),
                                 preferred_element_type=jnp.float32)     # [B, B]
    scores_t = jax.lax.dot_general(s, im, (((1,), (1,)), ((), ())),
                                   preferred_element_type=jnp.float32)   # scores.T
    B = scores.shape[0]
    row = jax.lax.broadcasted_iota(jnp.int32, (B, B), 0)
    col = jax.lax.broadcasted_iota(jnp.int32, (B, B), 1)
    eye = row == col
    d1 = jnp.sum(jnp.where(eye, scores, 0.0), axis=1, keepdims=True)     # scores[i,i]
    d1t = jnp.sum(jnp.where(eye, scores_t, 0.0), axis=1, keepdims=True)  # scores[j,j]

    cost_s = jnp.where(eye, 0.0, jnp.maximum(margin + scores - d1, 0.0))
    cost_im = jnp.where(eye, 0.0, jnp.maximum(margin + scores_t - d1t, 0.0))

    if max_violation:
        per_row = (jnp.max(cost_s, axis=1, keepdims=True)
                   + jnp.max(cost_im, axis=1, keepdims=True))            # [B, 1]
    else:
        per_row = (jnp.sum(cost_s, axis=1, keepdims=True)
                   + jnp.sum(cost_im, axis=1, keepdims=True))
    out_ref[...] = jnp.sum(per_row, axis=0, keepdims=True)               # [1, 1]


def contrastive_loss(img_emb, cap_emb, *, margin=0.2, max_violation=True):
    return pl.pallas_call(
        functools.partial(_loss_kernel, margin=margin, max_violation=max_violation),
        out_shape=jax.ShapeDtypeStruct((1, 1), jnp.float32),
        in_specs=[VMEM_SPEC, VMEM_SPEC],
        out_specs=VMEM_SPEC,
    )(img_emb.astype(jnp.bfloat16), cap_emb.astype(jnp.bfloat16))[0, 0]


# --------------------------------------------------------------------------
# VSEPP wrapper
# --------------------------------------------------------------------------
def init_vsepp_params(key, *, image_channels, embed_size, vocab_size, word_dim):
    ks = jax.random.split(key, 12)
    s = 0.1
    E3 = 3 * embed_size
    p = {
        # image encoder fc
        "img_w": s * jax.random.normal(ks[0], (image_channels, embed_size), jnp.float32),
        "img_b": s * jax.random.normal(ks[1], (1, embed_size), jnp.float32),
        # word embedding table
        "embed": s * jax.random.normal(ks[2], (vocab_size, word_dim), jnp.float32),
        # forward GRU (gates r,z,n fused on the last axis)
        "wi_f": s * jax.random.normal(ks[3], (word_dim, E3), jnp.float32),
        "wh_f": s * jax.random.normal(ks[4], (embed_size, E3), jnp.float32),
        "bi_f": s * jax.random.normal(ks[5], (1, E3), jnp.float32),
        "bh_f": s * jax.random.normal(ks[6], (1, E3), jnp.float32),
        # backward GRU
        "wi_b": s * jax.random.normal(ks[7], (word_dim, E3), jnp.float32),
        "wh_b": s * jax.random.normal(ks[8], (embed_size, E3), jnp.float32),
        "bi_b": s * jax.random.normal(ks[9], (1, E3), jnp.float32),
        "bh_b": s * jax.random.normal(ks[10], (1, E3), jnp.float32),
    }
    return p


def vsepp_forward(params, batch, *, margin=0.2, max_violation=True,
                  use_bi_gru=True, image_norm=True, text_norm=True):
    images = batch["image_feat"]                      # [B, C, H, W]  (NCHW)
    captions = batch["text_token"]                    # [B, T] int32
    lengths = batch["text_len"]                       # [B] int32

    # --- EncoderImage ---
    img_emb = encode_image(images, params["img_w"], params["img_b"],
                           image_norm=image_norm)     # [B, E]

    # --- EncoderText ---
    # Gather directly in [T, B, D] order (no big transposed HBM copy), flatten time
    # into rows for the hoisted input projection inside the kernel.
    B, T = captions.shape
    D = params["embed"].shape[1]
    tok_emb = jnp.take(params["embed"], captions.T, axis=0)               # [T, B, D]
    emb2d = tok_emb.reshape(T * B, D).astype(jnp.bfloat16)                # [T*B, D]
    cap_emb = encode_text(emb2d, lengths, params,
                          use_bi_gru=use_bi_gru, text_norm=text_norm)     # [B, E]

    # --- cosine_sim + ContrastiveLoss (fused) ---
    loss = contrastive_loss(img_emb, cap_emb, margin=margin,
                            max_violation=max_violation)
    return loss, img_emb, cap_emb


if __name__ == "__main__":
    key = jax.random.PRNGKey(0)

    # small but lane/sublane-aligned shapes (E, D, C multiples of 128; B multiple of 8)
    B, C, H, W = 16, 128, 8, 8
    T = 8                           # caption length (padded)
    embed_size = 128
    word_dim = 128
    vocab_size = 64

    kp, ki, kt = jax.random.split(key, 3)
    params = init_vsepp_params(kp, image_channels=C, embed_size=embed_size,
                               vocab_size=vocab_size, word_dim=word_dim)

    images = jax.random.normal(ki, (B, C, H, W), jnp.float32)
    captions = jax.random.randint(kt, (B, T), 0, vocab_size, jnp.int32)
    lengths = jnp.array([8, 7, 7, 6, 6, 5, 5, 4, 4, 3, 3, 2, 2, 2, 1, 8], jnp.int32)

    batch = {"image_feat": images, "text_token": captions, "text_len": lengths}

    loss, img_emb, cap_emb = vsepp_forward(params, batch,
                                           margin=0.2, max_violation=True,
                                           use_bi_gru=True)
    jax.block_until_ready(loss)
    jax.block_until_ready(img_emb)
    jax.block_until_ready(cap_emb)

    assert img_emb.shape == (B, embed_size)
    assert cap_emb.shape == (B, embed_size)
    assert loss.shape == ()
    assert bool(jnp.isfinite(loss))
    assert bool(jnp.all(jnp.isfinite(img_emb)))
    assert bool(jnp.all(jnp.isfinite(cap_emb)))

    print("KERNEL_OK")
</pallas_src>

<mosaic_0001>
module attributes {stable_mosaic.version = 11 : i64} {
  func.func @_img_enc_kernel(%arg0: i32, %arg1: memref<8x64x128xbf16, #tpu.memory_space<vmem>>, %arg2: memref<128x128xbf16, #tpu.memory_space<vmem>>, %arg3: memref<1x128xf32, #tpu.memory_space<vmem>>, %arg4: memref<8x128xf32, #tpu.memory_space<vmem>>) attributes {dimension_semantics = [#tpu.dimension_semantics<parallel>], iteration_bounds = array<i64: 2>, scalar_prefetch = 0 : i64, scratch_operands = 0 : i64, tpu.core_type = #tpu.core_type<tc>, window_params = [{transform_indices = @transform_0, window_bounds = array<i64: 8, 64, 128>}, {pipeline_mode = #tpu.pipeline_mode<synchronous>, transform_indices = @transform_1, window_bounds = array<i64: 128, 128>}, {pipeline_mode = #tpu.pipeline_mode<synchronous>, transform_indices = @transform_2, window_bounds = array<i64: 1, 128>}, {transform_indices = @transform_3, window_bounds = array<i64: 8, 128>}]} {
    %c0 = arith.constant 0 : index
    %c0_0 = arith.constant 0 : index
    %c0_1 = arith.constant 0 : index
    %0 = vector.load %arg1[%c0, %c0_0, %c0_1] : memref<8x64x128xbf16, #tpu.memory_space<vmem>>, vector<8x64x128xbf16>
    %1 = arith.extf %0 : vector<8x64x128xbf16> to vector<8x64x128xf32>
    %cst = arith.constant dense<0.000000e+00> : vector<8x128xf32>
    %2 = vector.multi_reduction <add>, %1, %cst [1] : vector<8x64x128xf32> to vector<8x128xf32>
    %cst_2 = arith.constant 6.400000e+01 : f32
    %3 = vector.broadcast %cst_2 : f32 to vector<8x128xf32>
    %4 = arith.divf %2, %3 : vector<8x128xf32>
    %5 = arith.truncf %4 : vector<8x128xf32> to vector<8x128xbf16>
    %c0_3 = arith.constant 0 : index
    %c0_4 = arith.constant 0 : index
    %6 = vector.load %arg2[%c0_3, %c0_4] : memref<128x128xbf16, #tpu.memory_space<vmem>>, vector<128x128xbf16>
    %cst_5 = arith.constant dense<0.000000e+00> : vector<8x128xf32>
    %7 = tpu.matmul %5, %6, %cst_5 {dimension_numbers = #tpu.dot_dimension_numbers<[1], [0], [0], [1], [0, 0, 1, 1], [], []>} : vector<8x128xbf16>, vector<128x128xbf16>, vector<8x128xf32> -> vector<8x128xf32>
    %c0_6 = arith.constant 0 : index
    %c0_7 = arith.constant 0 : index
    %8 = vector.load %arg3[%c0_6, %c0_7] : memref<1x128xf32, #tpu.memory_space<vmem>>, vector<1x128xf32>
    %9 = vector.broadcast %8 : vector<1x128xf32> to vector<8x128xf32>
    %10 = arith.addf %7, %9 : vector<8x128xf32>
    %11 = arith.mulf %10, %10 : vector<8x128xf32>
    %cst_8 = arith.constant dense<0.000000e+00> : vector<8xf32>
    %12 = vector.multi_reduction <add>, %11, %cst_8 [1] : vector<8x128xf32> to vector<8xf32>
    %13 = vector.shape_cast %12 : vector<8xf32> to vector<8x1xf32>
    %14 = math.sqrt %13 : vector<8x1xf32>
    %cst_9 = arith.constant 9.99999996E-13 : f32
    %15 = vector.broadcast %cst_9 : f32 to vector<8x1xf32>
    %16 = arith.addf %14, %15 : vector<8x1xf32>
    %17 = vector.broadcast %16 : vector<8x1xf32> to vector<8x128xf32>
    %18 = arith.divf %10, %17 : vector<8x128xf32>
    %c0_10 = arith.constant 0 : index
    %c0_11 = arith.constant 0 : index
    %19 = vector.load %arg4[%c0_10, %c0_11] : memref<8x128xf32, #tpu.memory_space<vmem>>, vector<8x128xf32>
    tpu.vector_store %arg4[%c0_10, %c0_11], %18 {strides = array<i32>} : memref<8x128xf32, #tpu.memory_space<vmem>>, vector<8x128xf32>,
    return
  }
  func.func @transform_0(%arg0: i32) -> (i32, i32, i32) {
    %c0_i32 = arith.constant 0 : i32
    %c0_i32_0 = arith.constant 0 : i32
    %c0_i32_1 = arith.constant 0 : i32
    return %arg0, %c0_i32, %c0_i32_0 : i32, i32, i32
  }
  func.func @transform_1(%arg0: i32) -> (i32, i32) {
    %c0_i32 = arith.constant 0 : i32
    %c0_i32_0 = arith.constant 0 : i32
    %c0_i32_1 = arith.constant 0 : i32
    return %c0_i32, %c0_i32_0 : i32, i32
  }
  func.func @transform_2(%arg0: i32) -> (i32, i32) {
    %c0_i32 = arith.constant 0 : i32
    %c0_i32_0 = arith.constant 0 : i32
    %c0_i32_1 = arith.constant 0 : i32
    return %c0_i32, %c0_i32_0 : i32, i32
  }
  func.func @transform_3(%arg0: i32) -> (i32, i32) {
    %c0_i32 = arith.constant 0 : i32
    %c0_i32_0 = arith.constant 0 : i32
    return %arg0, %c0_i32 : i32, i32
  }
}

</mosaic_0001>

<llo_original>
// kernel: tpu_custom_call.1
$region0: #{tpu_custom_call.1}
  #allocation0 [shape = 'u32[]', space=smem, size = 0x4, offset = 0x4, fixed_abs, tag = 'smem constant byte address 0x4 - core index']
  #allocation1 [shape = 'u32[72,128]{1,0:T(1,128)}', space=vmem, size = 0x9000, scoped, tag = 'internal scratch']
  %s0 = inlined_call_operand.hbm [shape: bf16[16,64,128], index: 0, kind: input, shape index: {}]
  %s1 = inlined_call_operand.hbm [shape: bf16[128,128], index: 1, kind: input, shape index: {}]
  %s2 = inlined_call_operand.vmem [shape: f32[1,128], index: 2, kind: input, shape index: {}]
  %s3 = inlined_call_operand.hbm [shape: f32[16,128], index: 3, kind: output, shape index: {}]
  %s4 = sld [smem:[#allocation0]]
  $region53: #{tpu_custom_call.1} parent=0
    _
  %s6 = ssub.s32 1, %s4
  %s7 = scalar_select 0, %s6, %s4
  $region1: #{tpu_custom_call.1} parent=0
    #allocation2 [shape = 'u8[262144]{0}', space=vmem, size = 0x40000, scoped, tag = 'input window, operand 0']
    #allocation3 [shape = 's32[2]{0}', space=sflag, size = 0x8, scoped, tag = 'scoped memory for tpu_custom_call.1']
    #allocation4 [shape = 's32[2]{0}', space=sflag, size = 0x8, scoped, tag = 'scoped memory for tpu_custom_call.1']
    #allocation5 [shape = 'u8[32768]{0}', space=vmem, size = 0x8000, scoped, tag = 'input window, operand 1, single buffered']
    #allocation6 [shape = 's32[1]{0}', space=sflag, size = 0x4, scoped, tag = 'scoped memory for tpu_custom_call.1']
    #allocation7 [shape = 'u8[8192]{0}', space=vmem, size = 0x2000, scoped, tag = 'output window, operand 0']
    %8 = vsyncpa [#allocation3], 0
    %s9 = scalar_lea.sflag [#allocation3], 1
    %10 = vsyncpa %s9, 0
    %11 = vsyncpa [#allocation6], 0
    %12 = vsyncpa [#allocation4], 0
    %s13 = scalar_lea.sflag [#allocation4], 1
    %14 = vsyncpa %s13, 0
    loop: start=0, step=1, limit=4
    $region2: #{tpu_custom_call.1} parent=1 // loop_pre_header
      _
    $region3: #{tpu_custom_call.1} parent=1 // loop_header
      %s16 = sphi 0, %s20
      %p17 = scmp.ge.s32.totalorder %s16, 4
      %s26 = sphi 0, %s28
      %s29 = sphi 0, %s26
      %s30 = sphi 0, %s29
      %s46 = sphi 0, %s30
      %s50 = sphi 0, %s50
      %s52 = sphi 0, %s50
      %s53 = sphi 0, %s52
      %s67 = sphi 0, %s53
      %s71 = sphi 0, %s71
      %s73 = sphi 0, %s71
      %s74 = sphi 0, %s73
      %s88 = sphi 0, %s74
      %s94 = sphi 0, %s96
      %s97 = sphi 0, %s94
      %s98 = sphi 0, %s97
      %s114 = sphi 0, %s98
    $region4: #{tpu_custom_call.1} parent=1 // loop_header_branch
      %19 = sbr.rel (%p17) target = $region8
    $region5: #{tpu_custom_call.1} parent=1 // loop_body
      %s21 = ssub.s32 %s16, 1
      %s22 = ssub.s32 %s16, 2
      %s23 = sadd.s32 %s16, 1
      %s24 = ssub.s32 %s16, %s23
      %p25 = scmp.eq.s32.totalorder %s24, 0
      %s27 = sadd.s32 %s26, 1
      %s28 = scalar_select %p25, %s26, %s27
      %p31 = pneg %p25
      %p32 = scmp.eq.s32.totalorder %s16, 1
      %p33 = por %p31, %p32
      %p34 = scmp.ne.s32.totalorder %s26, %s29
      %p35 = scmp.eq.s32.totalorder %s16, 0
      %p36 = por %p34, %p35
      %p37 = scmp.ne.s32.totalorder %s26, %s29
      %p38 = scmp.eq.s32.totalorder %s21, 1
      %p39 = por %p37, %p38
      %p40 = scmp.ne.s32.totalorder %s29, %s30
      %p41 = scmp.eq.s32.totalorder %s21, 0
      %p42 = por %p40, %p41
      %p43 = scmp.ne.s32.totalorder %s29, %s30
      %p44 = scmp.eq.s32.totalorder %s22, 1
      %p45 = por %p43, %p44
      %p47 = scmp.ne.s32.totalorder %s30, %s46
      %p48 = scmp.eq.s32.totalorder %s22, 0
      %p49 = por %p47, %p48
      %s51 = sadd.s32 %s50, 1
      %p54 = scmp.eq.s32.totalorder %s16, 1
      %p55 = scmp.ne.s32.totalorder %s50, %s52
      %p56 = scmp.eq.s32.totalorder %s16, 0
      %p57 = por %p55, %p56
      %p58 = scmp.ne.s32.totalorder %s50, %s52
      %p59 = scmp.eq.s32.totalorder %s21, 1
      %p60 = por %p58, %p59
      %p61 = scmp.ne.s32.totalorder %s52, %s53
      %p62 = scmp.eq.s32.totalorder %s21, 0
      %p63 = por %p61, %p62
      %p64 = scmp.ne.s32.totalorder %s52, %s53
      %p65 = scmp.eq.s32.totalorder %s22, 1
      %p66 = por %p64, %p65
      %p68 = scmp.ne.s32.totalorder %s53, %s67
      %p69 = scmp.eq.s32.totalorder %s22, 0
      %p70 = por %p68, %p69
      %s72 = sadd.s32 %s71, 1
      %p75 = scmp.eq.s32.totalorder %s16, 1
      %p76 = scmp.ne.s32.totalorder %s71, %s73
      %p77 = scmp.eq.s32.totalorder %s16, 0
      %p78 = por %p76, %p77
      %p79 = scmp.ne.s32.totalorder %s71, %s73
      %p80 = scmp.eq.s32.totalorder %s21, 1
      %p81 = por %p79, %p80
      %p82 = scmp.ne.s32.totalorder %s73, %s74
      %p83 = scmp.eq.s32.totalorder %s21, 0
      %p84 = por %p82, %p83
      %p85 = scmp.ne.s32.totalorder %s73, %s74
      %p86 = scmp.eq.s32.totalorder %s22, 1
      %p87 = por %p85, %p86
      %p89 = scmp.ne.s32.totalorder %s74, %s88
      %p90 = scmp.eq.s32.totalorder %s22, 0
      %p91 = por %p89, %p90
      %s92 = ssub.s32 %s16, %s23
      %p93 = scmp.eq.s32.totalorder %s92, 0
      %s95 = sadd.s32 %s94, 1
      %s96 = scalar_select %p93, %s94, %s95
      %p99 = pneg %p93
      %p100 = scmp.eq.s32.totalorder %s16, 1
      %p101 = por %p99, %p100
      %p102 = scmp.ne.s32.totalorder %s94, %s97
      %p103 = scmp.eq.s32.totalorder %s16, 0
      %p104 = por %p102, %p103
      %p105 = scmp.ne.s32.totalorder %s94, %s97
      %p106 = scmp.eq.s32.totalorder %s21, 1
      %p107 = por %p105, %p106
      %p108 = scmp.ne.s32.totalorder %s97, %s98
      %p109 = scmp.eq.s32.totalorder %s21, 0
      %p110 = por %p108, %p109
      %p111 = scmp.ne.s32.totalorder %s97, %s98
      %p112 = scmp.eq.s32.totalorder %s22, 1
      %p113 = por %p111, %p112
      %p115 = scmp.ne.s32.totalorder %s98, %s114
      %p116 = scmp.eq.s32.totalorder %s22, 0
      %p117 = por %p115, %p116
      %p118 = scmp.le.s32.totalorder 1, %s16
      %p119 = scmp.lt.s32.totalorder %s16, 3
      %p120 = pnand %p118, %p119
      %p121 = pneg %p120
      // Predicated region
      $region9: #{tpu_custom_call.1} parent=5 // pred_check
        _
      $region10: #{tpu_custom_call.1} parent=5 // pred_check_branch
        %123 = sbr.rel (%p120) target = $region12
      $region11: #{tpu_custom_call.1} parent=5 // pred_region
        %s124 = ssub.s32 %s16, 1
        // Predicated region
        $region13: #{tpu_custom_call.1} parent=11 // pred_check
          %p125 = pneg %p63
        $region14: #{tpu_custom_call.1} parent=11 // pred_check_branch
          %127 = sbr.rel (%p125) target = $region16
        $region15: #{tpu_custom_call.1} parent=11 // pred_region
          %129 = vsyncadd [#allocation6], 0
          %s130 = sshll.u32 %s1, 4
          %s131 = int_to_ptr.hbm [resolvable:$true] %s130
          %s132 = sshll.u32 [#allocation5], 4
          %s133 = int_to_ptr.vmem [resolvable:$true] %s132
          %138 = dma.hbm_to_vmem [thread:$0]  %s131, 1024, %s133, [#allocation6], 64, 64, 4
        $region16: #{tpu_custom_call.1} parent=11 // pred_fallthru
          _
        // Predicated region
        $region17: #{tpu_custom_call.1} parent=11 // pred_check
          %p139 = pneg %p84
        $region18: #{tpu_custom_call.1} parent=11 // pred_check_branch
          %141 = sbr.rel (%p139) target = $region20
        $region19: #{tpu_custom_call.1} parent=11 // pred_region
          _
        $region20: #{tpu_custom_call.1} parent=11 // pred_fallthru
          _
      $region12: #{tpu_custom_call.1} parent=5 // pred_fallthru
        _
      %p142 = scmp.lt.s32.totalorder %s16, 2
      // Predicated region
      $region21: #{tpu_custom_call.1} parent=5 // pred_check
        %p143 = pneg %p142
      $region22: #{tpu_custom_call.1} parent=5 // pred_check_branch
        %145 = sbr.rel (%p143) target = $region24
      $region23: #{tpu_custom_call.1} parent=5 // pred_region
        // Predicated region
        $region25: #{tpu_custom_call.1} parent=23 // pred_check
          %p146 = pneg %p36
        $region26: #{tpu_custom_call.1} parent=23 // pred_check_branch
          %148 = sbr.rel (%p146) target = $region28
        $region27: #{tpu_custom_call.1} parent=23 // pred_region
          %s149 = sand.u32 %s26, 1
          %s150 = scalar_lea.sflag [#allocation3], %s149
          %s151 = sand.u32 %s26, 1
          %s152 = smul.addr %s151, 256
          %s153 = scalar_lea.vmem [#allocation2], %s152
          %s154 = smul.u32 8, %s16
          %156 = vsyncadd %s150, 0
          %s157 = smul.addr %s154, 8
          %s158 = smul.addr %s157, 4
          %s159 = scalar_lea.hbm %s0, %s158
          %s160 = sshll.u32 %s159, 4
          %s161 = int_to_ptr.hbm [resolvable:$true] %s160
          %s162 = sshll.u32 %s153, 4
          %s163 = int_to_ptr.vmem [resolvable:$true] %s162
          %168 = dma.hbm_to_vmem [thread:$0]  %s161, 4096, %s163, %s150, 64, 64, 4
        $region28: #{tpu_custom_call.1} parent=23 // pred_fallthru
          _
      $region24: #{tpu_custom_call.1} parent=5 // pred_fallthru
        _
      %p169 = scmp.le.s32.totalorder 1, %s16
      %p170 = scmp.lt.s32.totalorder %s16, 3
      %p171 = pnand %p169, %p170
      %p172 = pneg %p171
      // Predicated region
      $region29: #{tpu_custom_call.1} parent=5 // pred_check
        _
      $region30: #{tpu_custom_call.1} parent=5 // pred_check_branch
        %174 = sbr.rel (%p171) target = $region32
      $region31: #{tpu_custom_call.1} parent=5 // pred_region
        %s175 = ssub.s32 %s16, 1
        %s176 = sand.u32 %s29, 1
        %s177 = scalar_lea.sflag [#allocation3], %s176
        %s178 = sand.u32 %s29, 1
        %s179 = smul.addr %s178, 256
        %s180 = scalar_lea.vmem [#allocation2], %s179
        // Predicated region
        $region33: #{tpu_custom_call.1} parent=31 // pred_check
          %p181 = pneg %p42
        $region34: #{tpu_custom_call.1} parent=31 // pred_check_branch
          %183 = sbr.rel (%p181) target = $region36
        $region35: #{tpu_custom_call.1} parent=31 // pred_region
          %185 = dma.done %s177, 4096
        $region36: #{tpu_custom_call.1} parent=31 // pred_fallthru
          _
        // Predicated region
        $region37: #{tpu_custom_call.1} parent=31 // pred_check
          %p186 = pneg %p63
        $region38: #{tpu_custom_call.1} parent=31 // pred_check_branch
          %188 = sbr.rel (%p186) target = $region40
        $region39: #{tpu_custom_call.1} parent=31 // pred_region
          %190 = dma.done [#allocation6], 1024
        $region40: #{tpu_custom_call.1} parent=31 // pred_fallthru
          _
        %s191 = sand.u32 %s29, 1
        %s192 = scalar_lea.sflag [#allocation3], %s191
        %s193 = sand.u32 %s29, 1
        %s194 = smul.addr %s193, 256
        %s195 = scalar_lea.vmem [#allocation2], %s194
        %p196 = pneg %p42
        %p197 = pneg %p39
        %p198 = pneg %p63
        %p199 = pneg %p60
        %p200 = pneg %p84
        %p201 = pneg %p81
        %p202 = pneg %p110
        %p203 = pneg %p107
        %s204 = sand.u32 %s97, 1
        %s205 = scalar_lea.sflag [#allocation4], %s204
        %s206 = sand.u32 %s97, 1
        %s207 = smul.addr %s206, 8
        %s208 = scalar_lea.vmem [#allocation7], %s207
        %s209 = smul.u32 8, %s21
        %v210 = vld [vmem:[%s180] sm:$0xf]
        %v211 = vld [vmem:[%s180 + $0x4] sm:$0xf]
        %v212 = vld [vmem:[%s180 + $0x8] sm:$0xf]
        %v213 = vld [vmem:[%s180 + $0xc] sm:$0xf]
        %v214 = vld [vmem:[%s180 + $0x10] sm:$0xf]
        %v215 = vld [vmem:[%s180 + $0x14] sm:$0xf]
        %v216 = vld [vmem:[%s180 + $0x18] sm:$0xf]
        %v217 = vld [vmem:[%s180 + $0x1c] sm:$0xf]
        %v218 = vld [vmem:[%s180 + $0x20] sm:$0xf]
        %v219 = vld [vmem:[%s180 + $0x24] sm:$0xf]
        %v220 = vld [vmem:[%s180 + $0x28] sm:$0xf]
        %v221 = vld [vmem:[%s180 + $0x2c] sm:$0xf]
        %v222 = vld [vmem:[%s180 + $0x30] sm:$0xf]
        %v223 = vld [vmem:[%s180 + $0x34] sm:$0xf]
        %v224 = vld [vmem:[%s180 + $0x38] sm:$0xf]
        %v225 = vld [vmem:[%s180 + $0x3c] sm:$0xf]
        %v226 = vld [vmem:[%s180 + $0x40] sm:$0xf]
        %v227 = vld [vmem:[%s180 + $0x44] sm:$0xf]
        %v228 = vld [vmem:[%s180 + $0x48] sm:$0xf]
        %v229 = vld [vmem:[%s180 + $0x4c] sm:$0xf]
        %v230 = vld [vmem:[%s180 + $0x50] sm:$0xf]
        %v231 = vld [vmem:[%s180 + $0x54] sm:$0xf]
        %v232 = vld [vmem:[%s180 + $0x58] sm:$0xf]
        %v233 = vld [vmem:[%s180 + $0x5c] sm:$0xf]
        %v234 = vld [vmem:[%s180 + $0x60] sm:$0xf]
        %v235 = vld [vmem:[%s180 + $0x64] sm:$0xf]
        %v236 = vld [vmem:[%s180 + $0x68] sm:$0xf]
        %v237 = vld [vmem:[%s180 + $0x6c] sm:$0xf]
        %v238 = vld [vmem:[%s180 + $0x70] sm:$0xf]
        %v239 = vld [vmem:[%s180 + $0x74] sm:$0xf]
        %v240 = vld [vmem:[%s180 + $0x78] sm:$0xf]
        %v241 = vld [vmem:[%s180 + $0x7c] sm:$0xf]
        %v242 = vld [vmem:[%s180 + $0x80] sm:$0xf]
        %v243 = vld [vmem:[%s180 + $0x84] sm:$0xf]
        %v244 = vld [vmem:[%s180 + $0x88] sm:$0xf]
        %v245 = vld [vmem:[%s180 + $0x8c] sm:$0xf]
        %v246 = vld [vmem:[%s180 + $0x90] sm:$0xf]
        %v247 = vld [vmem:[%s180 + $0x94] sm:$0xf]
        %v248 = vld [vmem:[%s180 + $0x98] sm:$0xf]
        %v249 = vld [vmem:[%s180 + $0x9c] sm:$0xf]
        %v250 = vld [vmem:[%s180 + $0xa0] sm:$0xf]
        %v251 = vld [vmem:[%s180 + $0xa4] sm:$0xf]
        %v252 = vld [vmem:[%s180 + $0xa8] sm:$0xf]
        %v253 = vld [vmem:[%s180 + $0xac] sm:$0xf]
        %v254 = vld [vmem:[%s180 + $0xb0] sm:$0xf]
        %v255 = vld [vmem:[%s180 + $0xb4] sm:$0xf]
        %v256 = vld [vmem:[%s180 + $0xb8] sm:$0xf]
        %v257 = vld [vmem:[%s180 + $0xbc] sm:$0xf]
        %v258 = vld [vmem:[%s180 + $0xc0] sm:$0xf]
        %v259 = vld [vmem:[%s180 + $0xc4] sm:$0xf]
        %v260 = vld [vmem:[%s180 + $0xc8] sm:$0xf]
        %v261 = vld [vmem:[%s180 + $0xcc] sm:$0xf]
        %v262 = vld [vmem:[%s180 + $0xd0] sm:$0xf]
        %v263 = vld [vmem:[%s180 + $0xd4] sm:$0xf]
        %v264 = vld [vmem:[%s180 + $0xd8] sm:$0xf]
        %v265 = vld [vmem:[%s180 + $0xdc] sm:$0xf]
        %v266 = vld [vmem:[%s180 + $0xe0] sm:$0xf]
        %v267 = vld [vmem:[%s180 + $0xe4] sm:$0xf]
        %v268 = vld [vmem:[%s180 + $0xe8] sm:$0xf]
        %v269 = vld [vmem:[%s180 + $0xec] sm:$0xf]
        %v270 = vld [vmem:[%s180 + $0xf0] sm:$0xf]
        %v271 = vld [vmem:[%s180 + $0xf4] sm:$0xf]
        %v272 = vld [vmem:[%s180 + $0xf8] sm:$0xf]
        %v273 = vld [vmem:[%s180 + $0xfc] sm:$0xf]
        %v274 = vunpack.c.l.bf16 %v210
        %v275 = vunpack.c.l.bf16 %v211
        %v276 = vunpack.c.l.bf16 %v212
        %v277 = vunpack.c.l.bf16 %v213
        %v278 = vunpack.c.l.bf16 %v214
        %v279 = vunpack.c.l.bf16 %v215
        %v280 = vunpack.c.l.bf16 %v216
        %v281 = vunpack.c.l.bf16 %v217
        %v282 = vunpack.c.l.bf16 %v218
        %v283 = vunpack.c.l.bf16 %v219
        %v284 = vunpack.c.l.bf16 %v220
        %v285 = vunpack.c.l.bf16 %v221
        %v286 = vunpack.c.l.bf16 %v222
        %v287 = vunpack.c.l.bf16 %v223
        %v288 = vunpack.c.l.bf16 %v224
        %v289 = vunpack.c.l.bf16 %v225
        %v290 = vunpack.c.l.bf16 %v226
        %v291 = vunpack.c.l.bf16 %v227
        %v292 = vunpack.c.l.bf16 %v228
        %v293 = vunpack.c.l.bf16 %v229
        %v294 = vunpack.c.l.bf16 %v230
        %v295 = vunpack.c.l.bf16 %v231
        %v296 = vunpack.c.l.bf16 %v232
        %v297 = vunpack.c.l.bf16 %v233
        %v298 = vunpack.c.l.bf16 %v234
        %v299 = vunpack.c.l.bf16 %v235
        %v300 = vunpack.c.l.bf16 %v236
        %v301 = vunpack.c.l.bf16 %v237
        %v302 = vunpack.c.l.bf16 %v238
        %v303 = vunpack.c.l.bf16 %v239
        %v304 = vunpack.c.l.bf16 %v240
        %v305 = vunpack.c.l.bf16 %v241
        %v306 = vunpack.c.l.bf16 %v242
        %v307 = vunpack.c.l.bf16 %v243
        %v308 = vunpack.c.l.bf16 %v244
        %v309 = vunpack.c.l.bf16 %v245
        %v310 = vunpack.c.l.bf16 %v246
        %v311 = vunpack.c.l.bf16 %v247
        %v312 = vunpack.c.l.bf16 %v248
        %v313 = vunpack.c.l.bf16 %v249
        %v314 = vunpack.c.l.bf16 %v250
        %v315 = vunpack.c.l.bf16 %v251
        %v316 = vunpack.c.l.bf16 %v252
        %v317 = vunpack.c.l.bf16 %v253
        %v318 = vunpack.c.l.bf16 %v254
        %v319 = vunpack.c.l.bf16 %v255
        %v320 = vunpack.c.l.bf16 %v256
        %v321 = vunpack.c.l.bf16 %v257
        %v322 = vunpack.c.l.bf16 %v258
        %v323 = vunpack.c.l.bf16 %v259
        %v324 = vunpack.c.l.bf16 %v260
        %v325 = vunpack.c.l.bf16 %v261
        %v326 = vunpack.c.l.bf16 %v262
        %v327 = vunpack.c.l.bf16 %v263
        %v328 = vunpack.c.l.bf16 %v264
        %v329 = vunpack.c.l.bf16 %v265
        %v330 = vunpack.c.l.bf16 %v266
        %v331 = vunpack.c.l.bf16 %v267
        %v332 = vunpack.c.l.bf16 %v268
        %v333 = vunpack.c.l.bf16 %v269
        %v334 = vunpack.c.l.bf16 %v270
        %v335 = vunpack.c.l.bf16 %v271
        %v336 = vunpack.c.l.bf16 %v272
        %v337 = vunpack.c.l.bf16 %v273
        %v338 = vadd.f32 %v274, %v275
        %v339 = vadd.f32 %v338, %v276
        %v340 = vadd.f32 %v339, %v277
        %v341 = vadd.f32 %v340, %v278
        %v342 = vadd.f32 %v341, %v279
        %v343 = vadd.f32 %v342, %v280
        %v344 = vadd.f32 %v343, %v281
        %v345 = vrot.slane %v344, 4
        %v346 = vadd.f32 %v344, %v345
        %v347 = vrot.slane %v346, 2
        %v348 = vadd.f32 %v346, %v347
        %v349 = vrot.slane %v348, 1
        %v350 = vadd.f32 %v348, %v349
        %v351 = vadd.f32 %v282, %v283
        %v352 = vadd.f32 %v351, %v284
        %v353 = vadd.f32 %v352, %v285
        %v354 = vadd.f32 %v353, %v286
        %v355 = vadd.f32 %v354, %v287
        %v356 = vadd.f32 %v355, %v288
        %v357 = vadd.f32 %v356, %v289
        %v358 = vrot.slane %v357, 4
        %v359 = vadd.f32 %v357, %v358
        %v360 = vrot.slane %v359, 2
        %v361 = vadd.f32 %v359, %v360
        %v362 = vrot.slane %v361, 1
        %v363 = vadd.f32 %v361, %v362
        %v364 = vadd.f32 %v290, %v291
        %v365 = vadd.f32 %v364, %v292
        %v366 = vadd.f32 %v365, %v293
        %v367 = vadd.f32 %v366, %v294
        %v368 = vadd.f32 %v367, %v295
        %v369 = vadd.f32 %v368, %v296
        %v370 = vadd.f32 %v369, %v297
        %v371 = vrot.slane %v370, 4
        %v372 = vadd.f32 %v370, %v371
        %v373 = vrot.slane %v372, 2
        %v374 = vadd.f32 %v372, %v373
        %v375 = vrot.slane %v374, 1
        %v376 = vadd.f32 %v374, %v375
        %v377 = vadd.f32 %v298, %v299
        %v378 = vadd.f32 %v377, %v300
        %v379 = vadd.f32 %v378, %v301
        %v380 = vadd.f32 %v379, %v302
        %v381 = vadd.f32 %v380, %v303
        %v382 = vadd.f32 %v381, %v304
        %v383 = vadd.f32 %v382, %v305
        %v384 = vrot.slane %v383, 4
        %v385 = vadd.f32 %v383, %v384
        %v386 = vrot.slane %v385, 2
        %v387 = vadd.f32 %v385, %v386
        %v388 = vrot.slane %v387, 1
        %v389 = vadd.f32 %v387, %v388
        %v390 = vadd.f32 %v306, %v307
        %v391 = vadd.f32 %v390, %v308
        %v392 = vadd.f32 %v391, %v309
        %v393 = vadd.f32 %v392, %v310
        %v394 = vadd.f32 %v393, %v311
        %v395 = vadd.f32 %v394, %v312
        %v396 = vadd.f32 %v395, %v313
        %v397 = vrot.slane %v396, 4
        %v398 = vadd.f32 %v396, %v397
        %v399 = vrot.slane %v398, 2
        %v400 = vadd.f32 %v398, %v399
        %v401 = vrot.slane %v400, 1
        %v402 = vadd.f32 %v400, %v401
        %v403 = vadd.f32 %v314, %v315
        %v404 = vadd.f32 %v403, %v316
        %v405 = vadd.f32 %v404, %v317
        %v406 = vadd.f32 %v405, %v318
        %v407 = vadd.f32 %v406, %v319
        %v408 = vadd.f32 %v407, %v320
        %v409 = vadd.f32 %v408, %v321
        %v410 = vrot.slane %v409, 4
        %v411 = vadd.f32 %v409, %v410
        %v412 = vrot.slane %v411, 2
        %v413 = vadd.f32 %v411, %v412
        %v414 = vrot.slane %v413, 1
        %v415 = vadd.f32 %v413, %v414
        %v416 = vadd.f32 %v322, %v323
        %v417 = vadd.f32 %v416, %v324
        %v418 = vadd.f32 %v417, %v325
        %v419 = vadd.f32 %v418, %v326
        %v420 = vadd.f32 %v419, %v327
        %v421 = vadd.f32 %v420, %v328
        %v422 = vadd.f32 %v421, %v329
        %v423 = vrot.slane %v422, 4
        %v424 = vadd.f32 %v422, %v423
        %v425 = vrot.slane %v424, 2
        %v426 = vadd.f32 %v424, %v425
        %v427 = vrot.slane %v426, 1
        %v428 = vadd.f32 %v426, %v427
        %v429 = vadd.f32 %v330, %v331
        %v430 = vadd.f32 %v429, %v332
        %v431 = vadd.f32 %v430, %v333
        %v432 = vadd.f32 %v431, %v334
        %v433 = vadd.f32 %v432, %v335
        %v434 = vadd.f32 %v433, %v336
        %v435 = vadd.f32 %v434, %v337
        %v436 = vrot.slane %v435, 4
        %v437 = vadd.f32 %v435, %v436
        %v438 = vrot.slane %v437, 2
        %v439 = vadd.f32 %v437, %v438
        %v440 = vrot.slane %v439, 1
        %v441 = vadd.f32 %v439, %v440
        %v442 = vrcp.pop 64.0
        %v443 = vmul.f32 64.0, %v442
        %v444 = vsub.f32 1.0, %v443
        %v445 = vmul.f32 %v442, %v444
        %v446 = vadd.f32 %v442, %v445
        %vm447 = vweird.f32 %v442
        %v448 = vsel %vm447, %v442, %v446
        %v449 = vmul.f32 %v350, %v448
        %v450 = vmul.f32 %v363, %v448
        %v451 = vmul.f32 %v376, %v448
        %v452 = vmul.f32 %v389, %v448
        %v453 = vmul.f32 %v402, %v448
        %v454 = vmul.f32 %v415, %v448
        %v455 = vmul.f32 %v428, %v448
        %v456 = vmul.f32 %v441, %v448
        %v457 = vpack.c.bf16 %v449, %v449
        %v458 = vpack.c.bf16 %v450, %v450
        %v459 = vpack.c.bf16 %v451, %v451
        %v460 = vpack.c.bf16 %v452, %v452
        %v461 = vpack.c.bf16 %v453, %v453
        %v462 = vpack.c.bf16 %v454, %v454
        %v463 = vpack.c.bf16 %v455, %v455
        %v464 = vpack.c.bf16 %v456, %v456
        %v465 = vld [vmem:[#allocation5] sm:$0xf]
        %v466 = vld [vmem:[#allocation5 + $0x4] sm:$0xf]
        %v467 = vld [vmem:[#allocation5 + $0x8] sm:$0xf]
        %v468 = vld [vmem:[#allocation5 + $0xc] sm:$0xf]
        %v469 = vld [vmem:[#allocation5 + $0x10] sm:$0xf]
        %v470 = vld [vmem:[#allocation5 + $0x14] sm:$0xf]
        %v471 = vld [vmem:[#allocation5 + $0x18] sm:$0xf]
        %v472 = vld [vmem:[#allocation5 + $0x1c] sm:$0xf]
        %v473 = vld [vmem:[#allocation5 + $0x20] sm:$0xf]
        %v474 = vld [vmem:[#allocation5 + $0x24] sm:$0xf]
        %v475 = vld [vmem:[#allocation5 + $0x28] sm:$0xf]
        %v476 = vld [vmem:[#allocation5 + $0x2c] sm:$0xf]
        %v477 = vld [vmem:[#allocation5 + $0x30] sm:$0xf]
        %v478 = vld [vmem:[#allocation5 + $0x34] sm:$0xf]
        %v479 = vld [vmem:[#allocation5 + $0x38] sm:$0xf]
        %v480 = vld [vmem:[#allocation5 + $0x3c] sm:$0xf]
        %v481 = vld [vmem:[%s2] sm:$0x1]
        %v483 = vperm.slane %v481, 0
        %v493 = vunpack.c.l.b16 %v457
        %v494 = vunpack.c.l.b16 %v458
        %v495 = vunpack.c.l.b16 %v459
        %v496 = vunpack.c.l.b16 %v460
        %v497 = vunpack.c.l.b16 %v461
        %v498 = vunpack.c.l.b16 %v462
        %v499 = vunpack.c.l.b16 %v463
        %v500 = vunpack.c.l.b16 %v464
        %vm501 = vcmask 1041409
        %v502 = vsel %vm501, %v494, %v493
        %vm503 = vcmask 1042434
        %v504 = vsel %vm503, %v495, %v502
        %vm505 = vcmask 1043459
        %v506 = vsel %vm505, %v496, %v504
        %vm507 = vcmask 1044484
        %v508 = vsel %vm507, %v497, %v506
        %vm509 = vcmask 1045509
        %v510 = vsel %vm509, %v498, %v508
        %vm511 = vcmask 1046534
        %v512 = vsel %vm511, %v499, %v510
        %vm513 = vcmask 1047559
        %v514 = vsel %vm513, %v500, %v512
        %v515 = vpack.c.b16 %v514, %v514
        %v533 = vunpack.c.l.b16 %v465
        %v534 = vunpack.c.l.b16 %v466
        %v535 = vunpack.c.l.b16 %v467
        %v536 = vunpack.c.l.b16 %v468
        %v537 = vunpack.c.l.b16 %v469
        %v538 = vunpack.c.l.b16 %v470
        %v539 = vunpack.c.l.b16 %v471
        %v540 = vunpack.c.l.b16 %v472
        %v541 = vunpack.c.l.b16 %v473
        %v542 = vunpack.c.l.b16 %v474
        %v543 = vunpack.c.l.b16 %v475
        %v544 = vunpack.c.l.b16 %v476
        %v545 = vunpack.c.l.b16 %v477
        %v546 = vunpack.c.l.b16 %v478
        %v547 = vunpack.c.l.b16 %v479
        %v548 = vunpack.c.l.b16 %v480
        %v549 = vpack.c.b16 %v534, %v533
        %v550 = vpack.c.b16 %v536, %v535
        %v551 = vpack.c.b16 %v538, %v537
        %v552 = vpack.c.b16 %v540, %v539
        %v553 = vpack.c.b16 %v542, %v541
        %v554 = vpack.c.b16 %v544, %v543
        %v555 = vpack.c.b16 %v546, %v545
        %v556 = vpack.c.b16 %v548, %v547
        %565 = vmatpush.bf16.msra.mxu0 %v556
        %566 = vmatpush.bf16.msra.mxu0 %v555
        %567 = vmatpush.bf16.msra.mxu0 %v554
        %568 = vmatpush.bf16.msra.mxu0 %v553
        %569 = vmatpush.bf16.msra.mxu0 %v552
        %570 = vmatpush.bf16.msra.mxu0 %v551
        %571 = vmatpush.bf16.msra.mxu0 %v550
        %572 = vmatpush.bf16.msra.mxu0 %v549
        %573 = vmatmul.bf16.gmra.mxu0 %v515
        %v574 = vpop.f32.mrf.mxu0
        %v575 = vadd.f32 %v483, %v574
        %v576 = vpop.f32.mrf.mxu0
        %577 = vdwg.mxu0
        %v578 = vmul.f32 %v575, %v575
        %579 = vadd.xlane.f32.xlu0 %v578
        %v580 = vpop.xlane.xlu0 %579
        %v581 = vrsqrt.pop %v580
        %v582 = vmul.f32 %v581, %v580
        %v583 = vmul.f32 %v582, %v581
        %v584 = vmul.f32 0.5, %v583
        %v585 = vsub.f32 1.5, %v584
        %v586 = vmul.f32 %v581, %v585
        %v587 = vmul.f32 %v580, %v586
        %vm588 = vcmp.eq.f32.partialorder %v580, inf
        %v589 = vsel %vm588, %v580, %v587
        %vm590 = vcmp.eq.f32.partialorder %v580, 0.0
        %v591 = vand.u32 %v580, 2147483648
        %v592 = vsel %vm590, %v591, %v589
        %v593 = vadd.f32 %v592, 1e-12
        %v594 = vrcp.pop %v593
        %v595 = vmul.f32 %v593, %v594
        %v596 = vsub.f32 1.0, %v595
        %v597 = vmul.f32 %v594, %v596
        %v598 = vadd.f32 %v594, %v597
        %vm599 = vweird.f32 %v593
        %vm600 = vweird.f32 %v594
        %vm601 = vmor %vm599, %vm600
        %v602 = vsel %vm601, %v594, %v598
        %v603 = vand.u32 2147483647, %v593
        %vm604 = vcmp.eq.f32.partialorder %v603, 8.507059e+37
        %v605 = vand.u32 %v593, 2147483648
        %v606 = vor.u32 1.1754944e-38, %v605
        %v607 = vsel %vm604, %v606, %v602
        %v608 = vmul.f32 %v575, %v607
        %609 = vst [vmem:[%s208] sm:$0xff] %v608
        %s610 = sand.u32 %s97, 1
        %s611 = scalar_lea.sflag [#allocation4], %s610
        %s612 = sand.u32 %s97, 1
        %s613 = smul.addr %s612, 8
        %s614 = scalar_lea.vmem [#allocation7], %s613
        // Predicated region
        $region41: #{tpu_custom_call.1} parent=31 // pred_check
          %p615 = pneg %p107
        $region42: #{tpu_custom_call.1} parent=31 // pred_check_branch
          %617 = sbr.rel (%p615) target = $region44
        $region43: #{tpu_custom_call.1} parent=31 // pred_region
          %619 = vsyncadd %s611, 0
          %s620 = smul.addr %s21, 8
          %s621 = scalar_lea.hbm %s3, %s620
          %s623 = sshll.u32 %s614, 4
          %s624 = int_to_ptr.vmem [resolvable:$true] %s623
          %s625 = sshll.u32 %s621, 4
          %s626 = int_to_ptr.hbm [resolvable:$true] %s625
          %628 = dma.vmem_to_hbm [thread:$0]  %s624, 128, %s626, %s611
        $region44: #{tpu_custom_call.1} parent=31 // pred_fallthru
          _
      $region32: #{tpu_custom_call.1} parent=5 // pred_fallthru
        _
      %p629 = scmp.le.s32.totalorder 2, %s16
      // Predicated region
      $region45: #{tpu_custom_call.1} parent=5 // pred_check
        %p630 = pneg %p629
      $region46: #{tpu_custom_call.1} parent=5 // pred_check_branch
        %632 = sbr.rel (%p630) target = $region48
      $region47: #{tpu_custom_call.1} parent=5 // pred_region
        %s633 = ssub.s32 %s16, 2
        // Predicated region
        $region49: #{tpu_custom_call.1} parent=47 // pred_check
          %p634 = pneg %p113
        $region50: #{tpu_custom_call.1} parent=47 // pred_check_branch
          %636 = sbr.rel (%p634) target = $region52
        $region51: #{tpu_custom_call.1} parent=47 // pred_region
          %s637 = sand.u32 %s98, 1
          %s638 = scalar_lea.sflag [#allocation4], %s637
          %s639 = sand.u32 %s98, 1
          %s640 = smul.addr %s639, 8
          %s641 = scalar_lea.vmem [#allocation7], %s640
          %643 = dma.done %s638, 128
        $region52: #{tpu_custom_call.1} parent=47 // pred_fallthru
          _
      $region48: #{tpu_custom_call.1} parent=5 // pred_fallthru
        _
    $region6: #{tpu_custom_call.1} parent=1 // loop_footer
      %s20 = sadd.s32 1, %s16
    $region7: #{tpu_custom_call.1} parent=1 // loop_footer_branch
      %15 = sbr.rel target = $region3
    $region8: #{tpu_custom_call.1} parent=1 // loop_exit
      _
    %644 = vsyncpa [#allocation3], 1
    %s645 = scalar_lea.sflag [#allocation3], 1
    %646 = vsyncpa %s645, 1
    %647 = vsyncpa [#allocation6], 1
    %648 = vsyncpa [#allocation4], 1
    %s649 = scalar_lea.sflag [#allocation4], 1
    %650 = vsyncpa %s649, 1

</llo_original>
